<compile_context>
chip_gen: v6e
topology: v6e:2x2x1
jax: 0.10.0
libtpu: 0.0.40
codegen_flags: <defaults>
</compile_context>

<pallas_src>
import numpy as np
import jax
import jax.numpy as jnp
from jax.experimental import pallas as pl
from jax.experimental.pallas import tpu as pltpu

SIGMA = 5          # module default
TRUNCATE = 4.0     # scipy.ndimage.gaussian_filter default


# ----------------------------- parameter setup (glue) -----------------------
def _gaussian_kernel1d(sigma, radius):
    x = np.arange(-radius, radius + 1, dtype=np.float64)
    k = np.exp(-0.5 * (x / sigma) ** 2)
    return k / k.sum()


def _reflect_index(j, L):
    # scipy 'reflect' mode (default): (d c b a | a b c d | d c b a), repeated.
    m = j % (2 * L)
    return m if m < L else 2 * L - 1 - m


def _blur_matrix(L, sigma):
    """Dense LxL operator equal to scipy's gaussian_filter1d along an axis of
    length L (truncate=4.0, mode='reflect')."""
    radius = int(TRUNCATE * sigma + 0.5)
    k = _gaussian_kernel1d(sigma, radius)
    B = np.zeros((L, L), dtype=np.float64)
    for i in range(L):
        for t in range(-radius, radius + 1):
            B[i, _reflect_index(i + t, L)] += k[t + radius]
    return B.astype(np.float32)


# --------------------------------- kernel -----------------------------------
def _unsharp_kernel(x_ref, st_ref, bm_ref, o_ref):
    # x_ref : (NC, HW) f32 VMEM  -- whole flattened batch (constant block index)
    # st_ref: (HW, TN) f32 VMEM  -- column block of kron(B_H, B_W)^T
    # bm_ref: (NC, NC) f32 VMEM  -- kron(B_N, B_C)
    # o_ref : (NC, TN) f32 VMEM  -- output column block
    tn = o_ref.shape[-1]
    start = pl.multiple_of(pl.program_id(0) * tn, tn)
    xb = x_ref[:, pl.ds(start, tn)]                       # block of x to subtract

    # Spatial blur for this column block: one lane-dense MXU matmul, K = HW.
    s = jnp.dot(x_ref[...], st_ref[...], preferred_element_type=jnp.float32)
    # Blur across the flattened batch/channel axis: (NC,NC) @ (NC,TN) on the MXU.
    b = jnp.dot(bm_ref[...], s, preferred_element_type=jnp.float32)

    o_ref[...] = xb - b


# --------------------------------- wrapper -----------------------------------
def _pick_block(hw):
    """Lane-aligned column block size; prefer >=2 grid steps (v7x megacore)."""
    if hw % 256 == 0 and hw >= 512:
        return 256
    if hw % 128 == 0 and hw >= 256:
        return 128
    return hw   # single block (full dims are always a legal block shape)


def unsharp_masking(img, sigma=SIGMA):
    img = jnp.asarray(img, jnp.float32)
    N, C, H, W = img.shape
    NC, HW = N * C, H * W

    bn = _blur_matrix(N, sigma)
    bc = _blur_matrix(C, sigma)
    bh = _blur_matrix(H, sigma)
    bw = _blur_matrix(W, sigma)
    bm = np.kron(bn, bc).astype(np.float32)        # (NC, NC) batch/channel blur
    st = np.kron(bh, bw).T.astype(np.float32)      # (HW, HW) spatial blur, pre-T
    # TODO(synk): for large H*W replace the dense kron(B_H,B_W) operator
    # (O((HW)^2) memory) with two separable banded matmuls (radius=int(4*sigma+0.5)).

    x2 = img.reshape(NC, HW)                       # lane-dense layout
    tn = _pick_block(HW)
    grid = (HW // tn,)

    out2 = pl.pallas_call(
        _unsharp_kernel,
        out_shape=jax.ShapeDtypeStruct((NC, HW), jnp.float32),
        grid=grid,
        in_specs=[
            pl.BlockSpec((NC, HW), lambda j: (0, 0)),   # x: resident, fetched once
            pl.BlockSpec((HW, tn), lambda j: (0, j)),   # kron(B_H,B_W)^T col block
            pl.BlockSpec((NC, NC), lambda j: (0, 0)),   # kron(B_N,B_C)
        ],
        out_specs=pl.BlockSpec((NC, tn), lambda j: (0, j)),
        compiler_params=pltpu.CompilerParams(
            dimension_semantics=("parallel",)),
    )(x2, jnp.asarray(st), jnp.asarray(bm))

    return out2.reshape(N, C, H, W)


# ----------------------------- pure-JAX reference ----------------------------
def _reference(img, sigma=SIGMA):
    N, C, H, W = img.shape
    bn = jnp.asarray(_blur_matrix(N, sigma))
    bc = jnp.asarray(_blur_matrix(C, sigma))
    bh = jnp.asarray(_blur_matrix(H, sigma))
    bw = jnp.asarray(_blur_matrix(W, sigma))
    b = jnp.einsum('ab,bchw->achw', bn, img)
    b = jnp.einsum('cd,adhw->achw', bc, b)
    b = jnp.einsum('hk,ackw->achw', bh, b)
    b = jnp.einsum('wl,achl->achw', bw, b)
    return img - b


if __name__ == "__main__":
    key = jax.random.PRNGKey(0)
    x = jax.random.normal(key, (2, 4, 16, 16), dtype=jnp.float32)

    out = jax.block_until_ready(unsharp_masking(x, sigma=SIGMA))

    ref = _reference(x, sigma=SIGMA)
    assert out.shape == x.shape and out.dtype == x.dtype
    np.testing.assert_allclose(np.asarray(out), np.asarray(ref), rtol=1e-4, atol=1e-4)
    print("KERNEL_OK")
</pallas_src>

<mosaic_0001>
module attributes {stable_mosaic.version = 11 : i64} {
  func.func @_unsharp_kernel(%arg0: i32, %arg1: memref<8x256xf32, #tpu.memory_space<vmem>>, %arg2: memref<256x128xf32, #tpu.memory_space<vmem>>, %arg3: memref<8x8xf32, #tpu.memory_space<vmem>>, %arg4: memref<8x128xf32, #tpu.memory_space<vmem>>) attributes {dimension_semantics = [#tpu.dimension_semantics<parallel>], iteration_bounds = array<i64: 2>, scalar_prefetch = 0 : i64, scratch_operands = 0 : i64, tpu.core_type = #tpu.core_type<tc>, window_params = [{pipeline_mode = #tpu.pipeline_mode<synchronous>, transform_indices = @transform_0, window_bounds = array<i64: 8, 256>}, {transform_indices = @transform_1, window_bounds = array<i64: 256, 128>}, {pipeline_mode = #tpu.pipeline_mode<synchronous>, transform_indices = @transform_2, window_bounds = array<i64: 8, 8>}, {transform_indices = @transform_3, window_bounds = array<i64: 8, 128>}]} {
    %c128_i32 = arith.constant 128 : i32
    %0 = arith.muli %arg0, %c128_i32 : i32
    %1 = tpu.assume_multiple %0, 128 : i32
    %c0 = arith.constant 0 : index
    %2 = arith.index_cast %1 : i32 to index
    %3 = vector.load %arg1[%c0, %2] : memref<8x256xf32, #tpu.memory_space<vmem>>, vector<8x128xf32>
    %c0_0 = arith.constant 0 : index
    %c0_1 = arith.constant 0 : index
    %4 = vector.load %arg1[%c0_0, %c0_1] : memref<8x256xf32, #tpu.memory_space<vmem>>, vector<8x256xf32>
    %c0_2 = arith.constant 0 : index
    %c0_3 = arith.constant 0 : index
    %5 = vector.load %arg2[%c0_2, %c0_3] : memref<256x128xf32, #tpu.memory_space<vmem>>, vector<256x128xf32>
    %cst = arith.constant dense<0.000000e+00> : vector<8x128xf32>
    %6 = tpu.matmul %4, %5, %cst {dimension_numbers = #tpu.dot_dimension_numbers<[1], [0], [0], [1], [0, 0, 1, 1], [], []>} : vector<8x256xf32>, vector<256x128xf32>, vector<8x128xf32> -> vector<8x128xf32>
    %c0_4 = arith.constant 0 : index
    %c0_5 = arith.constant 0 : index
    %7 = vector.load %arg3[%c0_4, %c0_5] : memref<8x8xf32, #tpu.memory_space<vmem>>, vector<8x8xf32>
    %cst_6 = arith.constant dense<0.000000e+00> : vector<8x128xf32>
    %8 = tpu.matmul %7, %6, %cst_6 {dimension_numbers = #tpu.dot_dimension_numbers<[1], [0], [0], [1], [0, 0, 1, 1], [], []>} : vector<8x8xf32>, vector<8x128xf32>, vector<8x128xf32> -> vector<8x128xf32>
    %9 = arith.subf %3, %8 : vector<8x128xf32>
    %c0_7 = arith.constant 0 : index
    %c0_8 = arith.constant 0 : index
    %10 = vector.load %arg4[%c0_7, %c0_8] : memref<8x128xf32, #tpu.memory_space<vmem>>, vector<8x128xf32>
    tpu.vector_store %arg4[%c0_7, %c0_8], %9 {strides = array<i32>} : memref<8x128xf32, #tpu.memory_space<vmem>>, vector<8x128xf32>,
    return
  }
  func.func @transform_0(%arg0: i32) -> (i32, i32) {
    %c0_i32 = arith.constant 0 : i32
    %c0_i32_0 = arith.constant 0 : i32
    %c0_i32_1 = arith.constant 0 : i32
    return %c0_i32, %c0_i32_0 : i32, i32
  }
  func.func @transform_1(%arg0: i32) -> (i32, i32) {
    %c0_i32 = arith.constant 0 : i32
    %c0_i32_0 = arith.constant 0 : i32
    return %c0_i32, %arg0 : i32, i32
  }
  func.func @transform_2(%arg0: i32) -> (i32, i32) {
    %c0_i32 = arith.constant 0 : i32
    %c0_i32_0 = arith.constant 0 : i32
    %c0_i32_1 = arith.constant 0 : i32
    return %c0_i32, %c0_i32_0 : i32, i32
  }
  func.func @transform_3(%arg0: i32) -> (i32, i32) {
    %c0_i32 = arith.constant 0 : i32
    %c0_i32_0 = arith.constant 0 : i32
    return %c0_i32, %arg0 : i32, i32
  }
}

</mosaic_0001>

<llo_original>
// kernel: tpu_custom_call.1
$region0: #{tpu_custom_call.1}
  #allocation0 [shape = 'u32[]', space=smem, size = 0x4, offset = 0x4, fixed_abs, tag = 'smem constant byte address 0x4 - core index']
  #allocation1 [shape = 'u32[144,128]{1,0:T(1,128)}', space=vmem, size = 0x12000, scoped, tag = 'internal scratch']
  %s0 = inlined_call_operand.hbm [shape: f32[8,256], index: 0, kind: input, shape index: {}]
  %s1 = inlined_call_operand.hbm [shape: f32[256,256], index: 1, kind: input, shape index: {}]
  %s2 = inlined_call_operand.hbm [shape: f32[8,8], index: 2, kind: input, shape index: {}]
  %s3 = inlined_call_operand.hbm [shape: f32[8,256], index: 3, kind: output, shape index: {}]
  %s4 = sld [smem:[#allocation0]]
  $region57: #{tpu_custom_call.1} parent=0
    _
  %s6 = ssub.s32 1, %s4
  %s7 = scalar_select 0, %s6, %s4
  $region1: #{tpu_custom_call.1} parent=0
    #allocation2 [shape = 'u8[8192]{0}', space=vmem, size = 0x2000, scoped, tag = 'input window, operand 0, single buffered']
    #allocation3 [shape = 's32[2]{0}', space=sflag, size = 0x8, scoped, tag = 'scoped memory for tpu_custom_call.1']
    #allocation4 [shape = 's32[2]{0}', space=sflag, size = 0x8, scoped, tag = 'scoped memory for tpu_custom_call.1']
    #allocation5 [shape = 'u8[262144]{0}', space=vmem, size = 0x40000, scoped, tag = 'input window, operand 1']
    #allocation6 [shape = 's32[2]{0}', space=sflag, size = 0x8, scoped, tag = 'scoped memory for tpu_custom_call.1']
    #allocation7 [shape = 'u8[4096]{0}', space=vmem, size = 0x1000, scoped, tag = 'input window, operand 2, single buffered']
    #allocation8 [shape = 'u8[8192]{0}', space=vmem, size = 0x2000, scoped, tag = 'output window, operand 0']
    %8 = vsyncpa [#allocation3], 0
    %9 = vsyncpa [#allocation6], 0
    %s10 = scalar_lea.sflag [#allocation6], 1
    %11 = vsyncpa %s10, 0
    %12 = vsyncpa [#allocation4], 0
    %s13 = scalar_lea.sflag [#allocation4], 1
    %14 = vsyncpa %s13, 0
    loop: start=0, step=1, limit=4
    $region2: #{tpu_custom_call.1} parent=1 // loop_pre_header
      _
    $region3: #{tpu_custom_call.1} parent=1 // loop_header
      %s16 = sphi 0, %s20
      %p17 = scmp.ge.s32.totalorder %s16, 4
      %s24 = sphi 0, %s24
      %s26 = sphi 0, %s24
      %s27 = sphi 0, %s26
      %s41 = sphi 0, %s27
      %s47 = sphi 0, %s49
      %s50 = sphi 0, %s47
      %s51 = sphi 0, %s50
      %s67 = sphi 0, %s51
      %s71 = sphi 0, %s71
      %s73 = sphi 0, %s71
      %s74 = sphi 0, %s73
      %s88 = sphi 0, %s74
      %s94 = sphi 0, %s96
      %s97 = sphi 0, %s94
      %s98 = sphi 0, %s97
      %s114 = sphi 0, %s98
    $region4: #{tpu_custom_call.1} parent=1 // loop_header_branch
      %19 = sbr.rel (%p17) target = $region8
    $region5: #{tpu_custom_call.1} parent=1 // loop_body
      %s21 = ssub.s32 %s16, 1
      %s22 = ssub.s32 %s16, 2
      %s23 = sadd.s32 %s16, 1
      %s25 = sadd.s32 %s24, 1
      %p28 = scmp.eq.s32.totalorder %s16, 1
      %p29 = scmp.ne.s32.totalorder %s24, %s26
      %p30 = scmp.eq.s32.totalorder %s16, 0
      %p31 = por %p29, %p30
      %p32 = scmp.ne.s32.totalorder %s24, %s26
      %p33 = scmp.eq.s32.totalorder %s21, 1
      %p34 = por %p32, %p33
      %p35 = scmp.ne.s32.totalorder %s26, %s27
      %p36 = scmp.eq.s32.totalorder %s21, 0
      %p37 = por %p35, %p36
      %p38 = scmp.ne.s32.totalorder %s26, %s27
      %p39 = scmp.eq.s32.totalorder %s22, 1
      %p40 = por %p38, %p39
      %p42 = scmp.ne.s32.totalorder %s27, %s41
      %p43 = scmp.eq.s32.totalorder %s22, 0
      %p44 = por %p42, %p43
      %s45 = ssub.s32 %s16, %s23
      %p46 = scmp.eq.s32.totalorder %s45, 0
      %s48 = sadd.s32 %s47, 1
      %s49 = scalar_select %p46, %s47, %s48
      %p52 = pneg %p46
      %p53 = scmp.eq.s32.totalorder %s16, 1
      %p54 = por %p52, %p53
      %p55 = scmp.ne.s32.totalorder %s47, %s50
      %p56 = scmp.eq.s32.totalorder %s16, 0
      %p57 = por %p55, %p56
      %p58 = scmp.ne.s32.totalorder %s47, %s50
      %p59 = scmp.eq.s32.totalorder %s21, 1
      %p60 = por %p58, %p59
      %p61 = scmp.ne.s32.totalorder %s50, %s51
      %p62 = scmp.eq.s32.totalorder %s21, 0
      %p63 = por %p61, %p62
      %p64 = scmp.ne.s32.totalorder %s50, %s51
      %p65 = scmp.eq.s32.totalorder %s22, 1
      %p66 = por %p64, %p65
      %p68 = scmp.ne.s32.totalorder %s51, %s67
      %p69 = scmp.eq.s32.totalorder %s22, 0
      %p70 = por %p68, %p69
      %s72 = sadd.s32 %s71, 1
      %p75 = scmp.eq.s32.totalorder %s16, 1
      %p76 = scmp.ne.s32.totalorder %s71, %s73
      %p77 = scmp.eq.s32.totalorder %s16, 0
      %p78 = por %p76, %p77
      %p79 = scmp.ne.s32.totalorder %s71, %s73
      %p80 = scmp.eq.s32.totalorder %s21, 1
      %p81 = por %p79, %p80
      %p82 = scmp.ne.s32.totalorder %s73, %s74
      %p83 = scmp.eq.s32.totalorder %s21, 0
      %p84 = por %p82, %p83
      %p85 = scmp.ne.s32.totalorder %s73, %s74
      %p86 = scmp.eq.s32.totalorder %s22, 1
      %p87 = por %p85, %p86
      %p89 = scmp.ne.s32.totalorder %s74, %s88
      %p90 = scmp.eq.s32.totalorder %s22, 0
      %p91 = por %p89, %p90
      %s92 = ssub.s32 %s16, %s23
      %p93 = scmp.eq.s32.totalorder %s92, 0
      %s95 = sadd.s32 %s94, 1
      %s96 = scalar_select %p93, %s94, %s95
      %p99 = pneg %p93
      %p100 = scmp.eq.s32.totalorder %s16, 1
      %p101 = por %p99, %p100
      %p102 = scmp.ne.s32.totalorder %s94, %s97
      %p103 = scmp.eq.s32.totalorder %s16, 0
      %p104 = por %p102, %p103
      %p105 = scmp.ne.s32.totalorder %s94, %s97
      %p106 = scmp.eq.s32.totalorder %s21, 1
      %p107 = por %p105, %p106
      %p108 = scmp.ne.s32.totalorder %s97, %s98
      %p109 = scmp.eq.s32.totalorder %s21, 0
      %p110 = por %p108, %p109
      %p111 = scmp.ne.s32.totalorder %s97, %s98
      %p112 = scmp.eq.s32.totalorder %s22, 1
      %p113 = por %p111, %p112
      %p115 = scmp.ne.s32.totalorder %s98, %s114
      %p116 = scmp.eq.s32.totalorder %s22, 0
      %p117 = por %p115, %p116
      %p118 = scmp.le.s32.totalorder 1, %s16
      %p119 = scmp.lt.s32.totalorder %s16, 3
      %p120 = pnand %p118, %p119
      %p121 = pneg %p120
      // Predicated region
      $region9: #{tpu_custom_call.1} parent=5 // pred_check
        _
      $region10: #{tpu_custom_call.1} parent=5 // pred_check_branch
        %123 = sbr.rel (%p120) target = $region12
      $region11: #{tpu_custom_call.1} parent=5 // pred_region
        %s124 = ssub.s32 %s16, 1
        // Predicated region
        $region13: #{tpu_custom_call.1} parent=11 // pred_check
          %p125 = pneg %p37
        $region14: #{tpu_custom_call.1} parent=11 // pred_check_branch
          %127 = sbr.rel (%p125) target = $region16
        $region15: #{tpu_custom_call.1} parent=11 // pred_region
          %s129 = ssub.s32 256, 256
          %130 = vsyncadd [#allocation3], %s129
          %s132 = sshll.u32 [#allocation2], 4
          %s133 = int_to_ptr.vmem [resolvable:$true] %s132
          %135 = dma.hbm_to_vmem [thread:$0]  %s0, 256, %s133, [#allocation3]
        $region16: #{tpu_custom_call.1} parent=11 // pred_fallthru
          _
        // Predicated region
        $region17: #{tpu_custom_call.1} parent=11 // pred_check
          %p136 = pneg %p84
        $region18: #{tpu_custom_call.1} parent=11 // pred_check_branch
          %138 = sbr.rel (%p136) target = $region20
        $region19: #{tpu_custom_call.1} parent=11 // pred_region
          %s140 = ssub.s32 128, 128
          %141 = vsyncadd [#allocation6], %s140
          %s143 = sshll.u32 [#allocation7], 4
          %s144 = int_to_ptr.vmem [resolvable:$true] %s143
          %146 = dma.hbm_to_vmem [thread:$0]  %s2, 128, %s144, [#allocation6]
        $region20: #{tpu_custom_call.1} parent=11 // pred_fallthru
          _
      $region12: #{tpu_custom_call.1} parent=5 // pred_fallthru
        _
      %p147 = scmp.lt.s32.totalorder %s16, 2
      // Predicated region
      $region21: #{tpu_custom_call.1} parent=5 // pred_check
        %p148 = pneg %p147
      $region22: #{tpu_custom_call.1} parent=5 // pred_check_branch
        %150 = sbr.rel (%p148) target = $region24
      $region23: #{tpu_custom_call.1} parent=5 // pred_region
        // Predicated region
        $region25: #{tpu_custom_call.1} parent=23 // pred_check
          %p151 = pneg %p57
        $region26: #{tpu_custom_call.1} parent=23 // pred_check_branch
          %153 = sbr.rel (%p151) target = $region28
        $region27: #{tpu_custom_call.1} parent=23 // pred_region
          %s154 = sand.u32 %s16, 1
          %s155 = scalar_lea.sflag [#allocation6], %s154
          %s156 = sand.u32 %s47, 1
          %s157 = smul.addr %s156, 256
          %s158 = scalar_lea.vmem [#allocation5], %s157
          %s160 = ssub.s32 4096, 4096
          %161 = vsyncadd %s155, %s160
          %s162 = smul.addr %s16, 128
          %s163 = scalar_lea.hbm %s1, %s162
          %s164 = sshll.u32 %s158, 4
          %s165 = int_to_ptr.vmem [resolvable:$true] %s164
          %170 = dma.hbm_to_vmem [thread:$0]  %s163, 4096, %s165, %s155, 256, 128, 8
        $region28: #{tpu_custom_call.1} parent=23 // pred_fallthru
          _
      $region24: #{tpu_custom_call.1} parent=5 // pred_fallthru
        _
      %p171 = scmp.le.s32.totalorder 1, %s16
      %p172 = scmp.lt.s32.totalorder %s16, 3
      %p173 = pnand %p171, %p172
      %p174 = pneg %p173
      // Predicated region
      $region29: #{tpu_custom_call.1} parent=5 // pred_check
        _
      $region30: #{tpu_custom_call.1} parent=5 // pred_check_branch
        %176 = sbr.rel (%p173) target = $region32
      $region31: #{tpu_custom_call.1} parent=5 // pred_region
        %s177 = ssub.s32 %s16, 1
        // Predicated region
        $region33: #{tpu_custom_call.1} parent=31 // pred_check
          %p178 = pneg %p37
        $region34: #{tpu_custom_call.1} parent=31 // pred_check_branch
          %180 = sbr.rel (%p178) target = $region36
        $region35: #{tpu_custom_call.1} parent=31 // pred_region
          %181 = dma.done [#allocation3], 256
        $region36: #{tpu_custom_call.1} parent=31 // pred_fallthru
          _
        %s182 = sand.u32 %s21, 1
        %s183 = scalar_lea.sflag [#allocation6], %s182
        %s184 = sand.u32 %s50, 1
        %s185 = smul.addr %s184, 256
        %s186 = scalar_lea.vmem [#allocation5], %s185
        // Predicated region
        $region37: #{tpu_custom_call.1} parent=31 // pred_check
          %p187 = pneg %p63
        $region38: #{tpu_custom_call.1} parent=31 // pred_check_branch
          %189 = sbr.rel (%p187) target = $region40
        $region39: #{tpu_custom_call.1} parent=31 // pred_region
          %190 = dma.done %s183, 4096
        $region40: #{tpu_custom_call.1} parent=31 // pred_fallthru
          _
        // Predicated region
        $region41: #{tpu_custom_call.1} parent=31 // pred_check
          %p191 = pneg %p84
        $region42: #{tpu_custom_call.1} parent=31 // pred_check_branch
          %193 = sbr.rel (%p191) target = $region44
        $region43: #{tpu_custom_call.1} parent=31 // pred_region
          %194 = dma.done [#allocation6], 128
        $region44: #{tpu_custom_call.1} parent=31 // pred_fallthru
          _
        %p195 = pneg %p37
        %p196 = pneg %p34
        %s197 = sand.u32 %s21, 1
        %s198 = scalar_lea.sflag [#allocation6], %s197
        %s199 = sand.u32 %s50, 1
        %s200 = smul.addr %s199, 256
        %s201 = scalar_lea.vmem [#allocation5], %s200
        %p202 = pneg %p63
        %p203 = pneg %p60
        %p204 = pneg %p84
        %p205 = pneg %p81
        %p206 = pneg %p110
        %p207 = pneg %p107
        %s208 = sand.u32 %s97, 1
        %s209 = scalar_lea.sflag [#allocation4], %s208
        %s210 = sand.u32 %s97, 1
        %s211 = smul.addr %s210, 8
        %s212 = scalar_lea.vmem [#allocation8], %s211
        %s213 = smul.u32 %s21, 128
        %s214 = sshra.s32 %s213, 7
        %s215 = sand.u32 %s213, 127
        %s216 = smul.addr %s214, 8
        %s217 = scalar_lea.vmem [#allocation2], %s216
        %v218 = vld [vmem:[%s217] sm:$0xff]
        %v219 = vld [vmem:[#allocation2] sm:$0xff]
        %v220 = vld [vmem:[#allocation2 + $0x8] sm:$0xff]
        %v221 = vld [vmem:[%s186] sm:$0xff]
        %v222 = vld [vmem:[%s186 + $0x8] sm:$0xff]
        %v223 = vld [vmem:[%s186 + $0x10] sm:$0xff]
        %v224 = vld [vmem:[%s186 + $0x18] sm:$0xff]
        %v225 = vld [vmem:[%s186 + $0x20] sm:$0xff]
        %v226 = vld [vmem:[%s186 + $0x28] sm:$0xff]
        %v227 = vld [vmem:[%s186 + $0x30] sm:$0xff]
        %v228 = vld [vmem:[%s186 + $0x38] sm:$0xff]
        %v229 = vld [vmem:[%s186 + $0x40] sm:$0xff]
        %v230 = vld [vmem:[%s186 + $0x48] sm:$0xff]
        %v231 = vld [vmem:[%s186 + $0x50] sm:$0xff]
        %v232 = vld [vmem:[%s186 + $0x58] sm:$0xff]
        %v233 = vld [vmem:[%s186 + $0x60] sm:$0xff]
        %v234 = vld [vmem:[%s186 + $0x68] sm:$0xff]
        %v235 = vld [vmem:[%s186 + $0x70] sm:$0xff]
        %v236 = vld [vmem:[%s186 + $0x78] sm:$0xff]
        %v237 = vld [vmem:[%s186 + $0x80] sm:$0xff]
        %v238 = vld [vmem:[%s186 + $0x88] sm:$0xff]
        %v239 = vld [vmem:[%s186 + $0x90] sm:$0xff]
        %v240 = vld [vmem:[%s186 + $0x98] sm:$0xff]
        %v241 = vld [vmem:[%s186 + $0xa0] sm:$0xff]
        %v242 = vld [vmem:[%s186 + $0xa8] sm:$0xff]
        %v243 = vld [vmem:[%s186 + $0xb0] sm:$0xff]
        %v244 = vld [vmem:[%s186 + $0xb8] sm:$0xff]
        %v245 = vld [vmem:[%s186 + $0xc0] sm:$0xff]
        %v246 = vld [vmem:[%s186 + $0xc8] sm:$0xff]
        %v247 = vld [vmem:[%s186 + $0xd0] sm:$0xff]
        %v248 = vld [vmem:[%s186 + $0xd8] sm:$0xff]
        %v249 = vld [vmem:[%s186 + $0xe0] sm:$0xff]
        %v250 = vld [vmem:[%s186 + $0xe8] sm:$0xff]
        %v251 = vld [vmem:[%s186 + $0xf0] sm:$0xff]
        %v252 = vld [vmem:[%s186 + $0xf8] sm:$0xff]
        %253 = vmatprep.subr.mxu0 0.0
        %254 = vmatpush1.msra.mxu0 %v236
        %255 = vmatprep.subr.mxu0 0.0
        %256 = vmatpush1.msra.mxu0 %v235
        %257 = vmatprep.subr.mxu0 0.0
        %258 = vmatpush1.msra.mxu0 %v234
        %259 = vmatprep.subr.mxu0 0.0
        %260 = vmatpush1.msra.mxu0 %v233
        %261 = vmatprep.subr.mxu0 0.0
        %262 = vmatpush1.msra.mxu0 %v232
        %263 = vmatprep.subr.mxu0 0.0
        %264 = vmatpush1.msra.mxu0 %v231
        %265 = vmatprep.subr.mxu0 0.0
        %266 = vmatpush1.msra.mxu0 %v230
        %267 = vmatprep.subr.mxu0 0.0
        %268 = vmatpush1.msra.mxu0 %v229
        %269 = vmatprep.subr.mxu0 0.0
        %270 = vmatpush1.msra.mxu0 %v228
        %271 = vmatprep.subr.mxu0 0.0
        %272 = vmatpush1.msra.mxu0 %v227
        %273 = vmatprep.subr.mxu0 0.0
        %274 = vmatpush1.msra.mxu0 %v226
        %275 = vmatprep.subr.mxu0 0.0
        %276 = vmatpush1.msra.mxu0 %v225
        %277 = vmatprep.subr.mxu0 0.0
        %278 = vmatpush1.msra.mxu0 %v224
        %279 = vmatprep.subr.mxu0 0.0
        %280 = vmatpush1.msra.mxu0 %v223
        %281 = vmatprep.subr.mxu0 0.0
        %282 = vmatpush1.msra.mxu0 %v222
        %283 = vmatprep.subr.mxu0 0.0
        %284 = vmatpush1.msra.mxu0 %v221
        %285 = vmatprep.subr.mxu0 0.0
        %286 = vmatpush2.msra.mxu0 %v252
        %287 = vmatprep.subr.mxu0 0.0
        %288 = vmatpush2.msra.mxu0 %v251
        %289 = vmatprep.subr.mxu0 0.0
        %290 = vmatpush2.msra.mxu0 %v250
        %291 = vmatprep.subr.mxu0 0.0
        %292 = vmatpush2.msra.mxu0 %v249
        %293 = vmatprep.subr.mxu0 0.0
        %294 = vmatpush2.msra.mxu0 %v248
        %295 = vmatprep.subr.mxu0 0.0
        %296 = vmatpush2.msra.mxu0 %v247
        %297 = vmatprep.subr.mxu0 0.0
        %298 = vmatpush2.msra.mxu0 %v246
        %299 = vmatprep.subr.mxu0 0.0
        %300 = vmatpush2.msra.mxu0 %v245
        %301 = vmatprep.subr.mxu0 0.0
        %302 = vmatpush2.msra.mxu0 %v244
        %303 = vmatprep.subr.mxu0 0.0
        %304 = vmatpush2.msra.mxu0 %v243
        %305 = vmatprep.subr.mxu0 0.0
        %306 = vmatpush2.msra.mxu0 %v242
        %307 = vmatprep.subr.mxu0 0.0
        %308 = vmatpush2.msra.mxu0 %v241
        %309 = vmatprep.subr.mxu0 0.0
        %310 = vmatpush2.msra.mxu0 %v240
        %311 = vmatprep.subr.mxu0 0.0
        %312 = vmatpush2.msra.mxu0 %v239
        %313 = vmatprep.subr.mxu0 0.0
        %314 = vmatpush2.msra.mxu0 %v238
        %315 = vmatprep.subr.mxu0 0.0
        %316 = vmatpush2.msra.mxu0 %v237
        %317 = vmatprep.mubr.f32.mxu0 %v220
        %318 = vmatmul.mubr.f32.gmra.mxu0 %v219
        %v319 = vpop.f32.mrf.mxu0
        %v320 = vadd.f32 0.0, %v319
        %v321 = vpop.f32.mrf.mxu0
        %322 = vdwg.mxu0
        %v323 = vld [vmem:[#allocation7] sm:$0xff]
        %vm324 = vcmask 64512
        %v326 = vsel %vm324, %v323, 0
        %328 = vmatprep.subr.mxu0 0.0
        %329 = vmatpush1.msra.mxu0 0.0
        %330 = vmatprep.subr.mxu0 0.0
        %331 = vmatpush1.msra.mxu0 0.0
        %332 = vmatprep.subr.mxu0 0.0
        %333 = vmatpush1.msra.mxu0 0.0
        %334 = vmatprep.subr.mxu0 0.0
        %335 = vmatpush1.msra.mxu0 0.0
        %336 = vmatprep.subr.mxu0 0.0
        %337 = vmatpush1.msra.mxu0 0.0
        %338 = vmatprep.subr.mxu0 0.0
        %339 = vmatpush1.msra.mxu0 0.0
        %340 = vmatprep.subr.mxu0 0.0
        %341 = vmatpush1.msra.mxu0 0.0
        %342 = vmatprep.subr.mxu0 0.0
        %343 = vmatpush1.msra.mxu0 0.0
        %344 = vmatprep.subr.mxu0 0.0
        %345 = vmatpush1.msra.mxu0 0.0
        %346 = vmatprep.subr.mxu0 0.0
        %347 = vmatpush1.msra.mxu0 0.0
        %348 = vmatprep.subr.mxu0 0.0
        %349 = vmatpush1.msra.mxu0 0.0
        %350 = vmatprep.subr.mxu0 0.0
        %351 = vmatpush1.msra.mxu0 0.0
        %352 = vmatprep.subr.mxu0 0.0
        %353 = vmatpush1.msra.mxu0 0.0
        %354 = vmatprep.subr.mxu0 0.0
        %355 = vmatpush1.msra.mxu0 0.0
        %356 = vmatprep.subr.mxu0 0.0
        %357 = vmatpush1.msra.mxu0 0.0
        %358 = vmatprep.subr.mxu0 0.0
        %359 = vmatpush1.msra.mxu0 %v320
        %360 = vmatprep.subr.mxu0 0.0
        %361 = vmatpush2.msra.mxu0 0.0
        %362 = vmatprep.subr.mxu0 0.0
        %363 = vmatpush2.msra.mxu0 0.0
        %364 = vmatprep.subr.mxu0 0.0
        %365 = vmatpush2.msra.mxu0 0.0
        %366 = vmatprep.subr.mxu0 0.0
        %367 = vmatpush2.msra.mxu0 0.0
        %368 = vmatprep.subr.mxu0 0.0
        %369 = vmatpush2.msra.mxu0 0.0
        %370 = vmatprep.subr.mxu0 0.0
        %371 = vmatpush2.msra.mxu0 0.0
        %372 = vmatprep.subr.mxu0 0.0
        %373 = vmatpush2.msra.mxu0 0.0
        %374 = vmatprep.subr.mxu0 0.0
        %375 = vmatpush2.msra.mxu0 0.0
        %376 = vmatprep.subr.mxu0 0.0
        %377 = vmatpush2.msra.mxu0 0.0
        %378 = vmatprep.subr.mxu0 0.0
        %379 = vmatpush2.msra.mxu0 0.0
        %380 = vmatprep.subr.mxu0 0.0
        %381 = vmatpush2.msra.mxu0 0.0
        %382 = vmatprep.subr.mxu0 0.0
        %383 = vmatpush2.msra.mxu0 0.0
        %384 = vmatprep.subr.mxu0 0.0
        %385 = vmatpush2.msra.mxu0 0.0
        %386 = vmatprep.subr.mxu0 0.0
        %387 = vmatpush2.msra.mxu0 0.0
        %388 = vmatprep.subr.mxu0 0.0
        %389 = vmatpush2.msra.mxu0 0.0
        %390 = vmatprep.subr.mxu0 0.0
        %391 = vmatpush2.msra.mxu0 0.0
        %392 = vmatprep.mubr.f32.mxu0 0.0
        %393 = vmatmul.mubr.f32.gmra.mxu0 %v326
        %v394 = vpop.f32.mrf.mxu0
        %v395 = vadd.f32 0.0, %v394
        %v396 = vpop.f32.mrf.mxu0
        %397 = vdwg.mxu0
        %v398 = vsub.f32 %v218, %v395
        %399 = vst [vmem:[%s212] sm:$0xff] %v398
        %s400 = sand.u32 %s97, 1
        %s401 = scalar_lea.sflag [#allocation4], %s400
        %s402 = sand.u32 %s97, 1
        %s403 = smul.addr %s402, 8
        %s404 = scalar_lea.vmem [#allocation8], %s403
        // Predicated region
        $region45: #{tpu_custom_call.1} parent=31 // pred_check
          %p405 = pneg %p107
        $region46: #{tpu_custom_call.1} parent=31 // pred_check_branch
          %407 = sbr.rel (%p405) target = $region48
        $region47: #{tpu_custom_call.1} parent=31 // pred_region
          %s409 = ssub.s32 128, 128
          %410 = vsyncadd %s401, %s409
          %s411 = smul.addr %s21, 128
          %s412 = scalar_lea.hbm %s3, %s411
          %s414 = sshll.u32 %s404, 4
          %s415 = int_to_ptr.vmem [resolvable:$true] %s414
          %417 = dma.vmem_to_hbm [thread:$0]  %s415, 128, %s412, %s401
        $region48: #{tpu_custom_call.1} parent=31 // pred_fallthru
          _
      $region32: #{tpu_custom_call.1} parent=5 // pred_fallthru
        _
      %p418 = scmp.le.s32.totalorder 2, %s16
      // Predicated region
      $region49: #{tpu_custom_call.1} parent=5 // pred_check
        %p419 = pneg %p418
      $region50: #{tpu_custom_call.1} parent=5 // pred_check_branch
        %421 = sbr.rel (%p419) target = $region52
      $region51: #{tpu_custom_call.1} parent=5 // pred_region
        %s422 = ssub.s32 %s16, 2
        // Predicated region
        $region53: #{tpu_custom_call.1} parent=51 // pred_check
          %p423 = pneg %p113
        $region54: #{tpu_custom_call.1} parent=51 // pred_check_branch
          %425 = sbr.rel (%p423) target = $region56
        $region55: #{tpu_custom_call.1} parent=51 // pred_region
          %s426 = sand.u32 %s98, 1
          %s427 = scalar_lea.sflag [#allocation4], %s426
          %s428 = sand.u32 %s98, 1
          %s429 = smul.addr %s428, 8
          %s430 = scalar_lea.vmem [#allocation8], %s429
          %431 = dma.done %s427, 128
        $region56: #{tpu_custom_call.1} parent=51 // pred_fallthru
          _
      $region52: #{tpu_custom_call.1} parent=5 // pred_fallthru
        _
    $region6: #{tpu_custom_call.1} parent=1 // loop_footer
      %s20 = sadd.s32 1, %s16
    $region7: #{tpu_custom_call.1} parent=1 // loop_footer_branch
      %15 = sbr.rel target = $region3
    $region8: #{tpu_custom_call.1} parent=1 // loop_exit
      _
    %432 = vsyncpa [#allocation3], 1
    %s433 = scalar_lea.sflag [#allocation3], 1
    %434 = vsyncpa %s433, 1
    %435 = vsyncpa [#allocation6], 1
    %s436 = scalar_lea.sflag [#allocation6], 1
    %437 = vsyncpa %s436, 1
    %438 = vsyncpa [#allocation4], 1
    %s439 = scalar_lea.sflag [#allocation4], 1
    %440 = vsyncpa %s439, 1

</llo_original>
